<compile_context>
chip_gen: v7x
topology: tpu7x:2x2x1
jax: 0.10.0
libtpu: 0.0.40
codegen_flags: <defaults>
</compile_context>

<pallas_src>
import jax
import jax.numpy as jnp
from jax.experimental import pallas as pl
from jax.experimental.pallas import tpu as pltpu


def _pool_l2norm_kernel(emb_ref, mask_ref, out_ref):
    """One grid step handles a block of batch rows, fully fused:
       masked sum over tokens -> clamped mean -> L2 normalize."""
    emb = emb_ref[...]                                   # (Bt, S, H) f32
    mask = mask_ref[...]                                 # (Bt, S)    f32

    # Masked sum over the token axis (VPU multiply + sublane reduction).
    summed = jnp.sum(emb * mask[:, :, None], axis=1)     # (Bt, H)
    counts = jnp.sum(mask, axis=1, keepdims=True)        # (Bt, 1)

    # torch.clamp(..., min=1e-9); exact reciprocal keeps 1e-5 parity with reference.
    pooled = summed * pl.reciprocal(jnp.maximum(counts, 1e-9), approx=False)

    # F.normalize(p=2, dim=1, eps=1e-12): x / max(||x||_2, eps)
    sq = jnp.sum(pooled * pooled, axis=1, keepdims=True)  # (Bt, 1)
    inv_norm = pl.reciprocal(jnp.maximum(jnp.sqrt(sq), 1e-12), approx=False)
    out_ref[...] = pooled * inv_norm


def feature_extract_forward(token_embeddings, attention_mask, *, batch_block=None):
    """token_embeddings: (B, S, H); attention_mask: (B, S) {0,1}.
    Returns L2-normalized mean-pooled sentence embeddings (B, H)."""
    B, S, H = token_embeddings.shape

    emb_f = token_embeddings.astype(jnp.float32)
    mask_f = attention_mask.astype(jnp.float32)          # == .float() in torch

    if batch_block is None:
        batch_block = B                                   # single fused block
    assert B % batch_block == 0, "batch_block must divide batch"
    nb = B // batch_block

    return pl.pallas_call(
        _pool_l2norm_kernel,
        out_shape=jax.ShapeDtypeStruct((B, H), jnp.float32),
        grid=(nb,),
        in_specs=[
            pl.BlockSpec((batch_block, S, H), lambda b: (b, 0, 0)),   # token embeddings
            pl.BlockSpec((batch_block, S), lambda b: (b, 0)),         # attention mask
        ],
        out_specs=pl.BlockSpec((batch_block, H), lambda b: (b, 0)),
        compiler_params=pltpu.CompilerParams(
            dimension_semantics=("parallel",)),
    )(emb_f, mask_f)


def _reference_forward(token_embeddings, attention_mask):
    """Pure-JAX reference mirroring the PyTorch module exactly."""
    m = attention_mask[..., None].astype(jnp.float32)     # expand + .float()
    emb = token_embeddings.astype(jnp.float32)
    pooled = jnp.sum(emb * m, axis=1) / jnp.maximum(jnp.sum(m, axis=1), 1e-9)
    norm = jnp.sqrt(jnp.sum(pooled * pooled, axis=1, keepdims=True))
    return pooled / jnp.maximum(norm, 1e-12)              # F.normalize(p=2, dim=1)


if __name__ == "__main__":
    # Small shapes consistent with the module: (batch, seq, hidden).
    # Hidden is kept lane-dense (multiple of 128), like real sentence-transformer
    # hidden sizes (768, 1024, ...).
    B, S, H = 2, 8, 128

    key = jax.random.PRNGKey(0)
    k_emb, _ = jax.random.split(key)
    token_embeddings = jax.random.normal(k_emb, (B, S, H), dtype=jnp.float32)

    # Ragged valid-token counts -> 0/1 attention mask (int, as HF tokenizers emit).
    lengths = jnp.array([8, 5], dtype=jnp.int32)
    attention_mask = (jnp.arange(S)[None, :] < lengths[:, None]).astype(jnp.int32)

    out = feature_extract_forward(token_embeddings, attention_mask)
    out = jax.block_until_ready(out)

    ref = _reference_forward(token_embeddings, attention_mask)
    ref = jax.block_until_ready(ref)

    assert out.shape == (B, H), out.shape
    assert jnp.allclose(out, ref, atol=1e-5, rtol=1e-5), (
        f"max abs err = {jnp.max(jnp.abs(out - ref))}")

    print("KERNEL_OK")
</pallas_src>

<mosaic_0001>
module attributes {stable_mosaic.version = 11 : i64} {
  func.func @_pool_l2norm_kernel(%arg0: i32, %arg1: memref<2x8x128xf32, #tpu.memory_space<vmem>>, %arg2: memref<2x8xf32, #tpu.memory_space<vmem>>, %arg3: memref<2x128xf32, #tpu.memory_space<vmem>>) attributes {dimension_semantics = [#tpu.dimension_semantics<parallel>], iteration_bounds = array<i64: 1>, scalar_prefetch = 0 : i64, scratch_operands = 0 : i64, tpu.core_type = #tpu.core_type<tc>, window_params = [{transform_indices = @transform_0, window_bounds = array<i64: 2, 8, 128>}, {transform_indices = @transform_1, window_bounds = array<i64: 2, 8>}, {transform_indices = @transform_2, window_bounds = array<i64: 2, 128>}]} {
    %c0 = arith.constant 0 : index
    %c0_0 = arith.constant 0 : index
    %c0_1 = arith.constant 0 : index
    %0 = vector.load %arg1[%c0, %c0_0, %c0_1] : memref<2x8x128xf32, #tpu.memory_space<vmem>>, vector<2x8x128xf32>
    %c0_2 = arith.constant 0 : index
    %c0_3 = arith.constant 0 : index
    %1 = vector.load %arg2[%c0_2, %c0_3] : memref<2x8xf32, #tpu.memory_space<vmem>>, vector<2x8xf32>
    %2 = vector.shape_cast %1 : vector<2x8xf32> to vector<2x8x1xf32>
    %3 = vector.broadcast %2 : vector<2x8x1xf32> to vector<2x8x128xf32>
    %4 = arith.mulf %0, %3 : vector<2x8x128xf32>
    %cst = arith.constant dense<0.000000e+00> : vector<2x128xf32>
    %5 = vector.multi_reduction <add>, %4, %cst [1] : vector<2x8x128xf32> to vector<2x128xf32>
    %cst_4 = arith.constant dense<0.000000e+00> : vector<2xf32>
    %6 = vector.multi_reduction <add>, %1, %cst_4 [1] : vector<2x8xf32> to vector<2xf32>
    %7 = vector.shape_cast %6 : vector<2xf32> to vector<2x1xf32>
    %cst_5 = arith.constant 9.99999971E-10 : f32
    %8 = vector.broadcast %cst_5 : f32 to vector<2x1xf32>
    %9 = arith.maximumf %7, %8 : vector<2x1xf32>
    %10 = tpu.reciprocal %9 : vector<2x1xf32> -> vector<2x1xf32>
    %11 = vector.broadcast %10 : vector<2x1xf32> to vector<2x128xf32>
    %12 = arith.mulf %5, %11 : vector<2x128xf32>
    %13 = arith.mulf %12, %12 : vector<2x128xf32>
    %cst_6 = arith.constant dense<0.000000e+00> : vector<2xf32>
    %14 = vector.multi_reduction <add>, %13, %cst_6 [1] : vector<2x128xf32> to vector<2xf32>
    %15 = vector.shape_cast %14 : vector<2xf32> to vector<2x1xf32>
    %16 = math.sqrt %15 : vector<2x1xf32>
    %cst_7 = arith.constant 9.99999996E-13 : f32
    %17 = vector.broadcast %cst_7 : f32 to vector<2x1xf32>
    %18 = arith.maximumf %16, %17 : vector<2x1xf32>
    %19 = tpu.reciprocal %18 : vector<2x1xf32> -> vector<2x1xf32>
    %20 = vector.broadcast %19 : vector<2x1xf32> to vector<2x128xf32>
    %21 = arith.mulf %12, %20 : vector<2x128xf32>
    %c0_8 = arith.constant 0 : index
    %c0_9 = arith.constant 0 : index
    %22 = vector.load %arg3[%c0_8, %c0_9] : memref<2x128xf32, #tpu.memory_space<vmem>>, vector<2x128xf32>
    tpu.vector_store %arg3[%c0_8, %c0_9], %21 {strides = array<i32>} : memref<2x128xf32, #tpu.memory_space<vmem>>, vector<2x128xf32>,
    return
  }
  func.func @transform_0(%arg0: i32) -> (i32, i32, i32) {
    %c0_i32 = arith.constant 0 : i32
    %c0_i32_0 = arith.constant 0 : i32
    %c0_i32_1 = arith.constant 0 : i32
    return %arg0, %c0_i32, %c0_i32_0 : i32, i32, i32
  }
  func.func @transform_1(%arg0: i32) -> (i32, i32) {
    %c0_i32 = arith.constant 0 : i32
    %c0_i32_0 = arith.constant 0 : i32
    return %arg0, %c0_i32 : i32, i32
  }
  func.func @transform_2(%arg0: i32) -> (i32, i32) {
    %c0_i32 = arith.constant 0 : i32
    %c0_i32_0 = arith.constant 0 : i32
    return %arg0, %c0_i32 : i32, i32
  }
}

</mosaic_0001>

<llo_original>
// kernel: tpu_custom_call.1
$region0: #{tpu_custom_call.1}
  #allocation0 [shape = 'u32[]', space=smem, size = 0x4, offset = 0x4, fixed_abs, tag = 'smem constant byte address 0x4 - core index']
  #allocation1 [shape = 'u32[144,128]{1,0:T(1,128)}', space=vmem, size = 0x12000, scoped, tag = 'internal scratch']
  %s0 = inlined_call_operand.hbm [shape: f32[2,8,128], index: 0, kind: input, shape index: {}]
  %s1 = inlined_call_operand.vmem [shape: f32[2,8], index: 1, kind: input, shape index: {}]
  %s2 = inlined_call_operand.hbm [shape: f32[2,128], index: 2, kind: output, shape index: {}]
  %s3 = sld [smem:[#allocation0]]
  $region22: #{tpu_custom_call.1} parent=0
    _
  %s5 = ssub.s32 1, %s3
  %s6 = scalar_select 0, %s5, %s3
  $region1: #{tpu_custom_call.1} parent=0
    #allocation2 [shape = 'u8[8192]{0}', space=vmem, size = 0x2000, scoped, tag = 'input window, operand 0, single buffered']
    #allocation3 [shape = 's32[1]{0}', space=sflag, size = 0x4, scoped, tag = 'scoped memory for tpu_custom_call.1']
    #allocation4 [shape = 's32[1]{0}', space=sflag, size = 0x4, scoped, tag = 'scoped memory for tpu_custom_call.1']
    #allocation5 [shape = 'u8[1024]{0}', space=vmem, size = 0x400, scoped, tag = 'output window, operand 0, single buffered']
    %7 = vsyncpa [#allocation3], 0
    %8 = vsyncpa [#allocation4], 0
    // Predicated region
    $region2: #{tpu_custom_call.1} parent=1 // pred_check
      _
    $region3: #{tpu_custom_call.1} parent=1 // pred_check_branch
      %10 = sbr.rel (0) target = $region5
    $region4: #{tpu_custom_call.1} parent=1 // pred_region
      %s12 = ssub.s32 256, 256
      %13 = vsyncadd [#allocation3], %s12
      %s14 = sshll.u32 [#allocation2], 4
      %s15 = int_to_ptr.vmem [resolvable:$true] %s14
      %20 = dma.hbm_to_vmem [thread:$0]  %s0, 256, %s15, [#allocation3], 128, 128, 8
    $region5: #{tpu_custom_call.1} parent=1 // pred_fallthru
      _
    // Predicated region
    $region6: #{tpu_custom_call.1} parent=1 // pred_check
      _
    $region7: #{tpu_custom_call.1} parent=1 // pred_check_branch
      %22 = sbr.rel (0) target = $region9
    $region8: #{tpu_custom_call.1} parent=1 // pred_region
      _
    $region9: #{tpu_custom_call.1} parent=1 // pred_fallthru
      _
    // Predicated region
    $region10: #{tpu_custom_call.1} parent=1 // pred_check
      _
    $region11: #{tpu_custom_call.1} parent=1 // pred_check_branch
      %24 = sbr.rel (0) target = $region13
    $region12: #{tpu_custom_call.1} parent=1 // pred_region
      %25 = dma.done [#allocation3], 256
    $region13: #{tpu_custom_call.1} parent=1 // pred_fallthru
      _
    %v26 = vld [vmem:[#allocation2] sm:$0xff]
    %v27 = vld [vmem:[#allocation2 + $0x8] sm:$0xff]
    %v28 = vld [vmem:[%s1] sm:$0x3]
    %v29 = vlaneseq
    %v30 = vshrl.u32 %v29, 7
    %v31 = vsub.s32 0, %v30
    %v32 = vrot.slane %v28, %v31
    %34 = vbcast.lane.b32.xlu0 %v32, 256
    %v35 = vpop.permute.xlu0 %34
    %v36 = vlaneseq
    %v37 = vshrl.u32 %v36, 7
    %v38 = vsub.s32 1, %v37
    %v39 = vrot.slane %v28, %v38
    %41 = vbcast.lane.b32.xlu0 %v39, 256
    %v42 = vpop.permute.xlu0 %41
    %v43 = vmul.f32 %v26, %v35
    %v44 = vmul.f32 %v27, %v42
    %v45 = vrot.slane %v43, 4
    %v46 = vadd.f32 %v43, %v45
    %v47 = vrot.slane %v46, 2
    %v48 = vadd.f32 %v46, %v47
    %v49 = vrot.slane %v48, 1
    %v50 = vadd.f32 %v48, %v49
    %v51 = vrot.slane %v44, 4
    %v52 = vadd.f32 %v44, %v51
    %v53 = vrot.slane %v52, 2
    %v54 = vadd.f32 %v52, %v53
    %v55 = vrot.slane %v54, 1
    %v56 = vadd.f32 %v54, %v55
    %vm57 = vcmask 58368
    %v58 = vsel %vm57, %v28, 0.0
    %59 = vadd.xlane.f32.xlu0 %v58
    %v60 = vpop.xlane.xlu0 %59
    %v61 = vmax.f32 %v60, 1e-09
    %v62 = vrcp.pop %v61
    %v64 = vrot.slane %v62, 1
    %v67 = vmul.f32 %v50, %v62
    %v68 = vmul.f32 %v56, %v64
    %v69 = vmul.f32 %v67, %v67
    %v70 = vmul.f32 %v68, %v68
    %v73 = vrot.slane %v70, 7
    %vm74 = vcmask 1041409
    %v75 = vsel %vm74, %v73, %v69
    %vm77 = vcmask 1041408
    %v78 = vsel %vm77, %v75, 0.0
    %79 = vadd.xlane.f32.xlu0 %v78
    %v80 = vpop.xlane.xlu0 %79
    %v81 = vrsqrt.pop %v80
    %v82 = vmul.f32 %v80, %v81
    %vm83 = vcmp.eq.f32.partialorder %v80, inf
    %v84 = vsel %vm83, %v80, %v82
    %vm85 = vcmp.eq.f32.partialorder %v80, 0.0
    %v86 = vand.u32 %v80, 2147483648
    %v87 = vsel %vm85, %v86, %v84
    %v88 = vmax.f32 %v87, 1e-12
    %v89 = vrcp.pop %v88
    %v91 = vrot.slane %v89, 1
    %v94 = vmul.f32 %v67, %v89
    %v95 = vmul.f32 %v68, %v91
    %v98 = vrot.slane %v95, 7
    %v99 = vsel %vm74, %v98, %v94
    %101 = vst [vmem:[#allocation5] sm:$0x3] %v99
    // Predicated region
    $region14: #{tpu_custom_call.1} parent=1 // pred_check
      _
    $region15: #{tpu_custom_call.1} parent=1 // pred_check_branch
      %103 = sbr.rel (0) target = $region17
    $region16: #{tpu_custom_call.1} parent=1 // pred_region
      %s105 = ssub.s32 32, 32
      %106 = vsyncadd [#allocation4], %s105
      %s108 = sshll.u32 [#allocation5], 4
      %s109 = int_to_ptr.vmem [resolvable:$true] %s108
      %111 = dma.vmem_to_hbm [thread:$0]  %s109, 32, %s2, [#allocation4]
    $region17: #{tpu_custom_call.1} parent=1 // pred_fallthru
      _
    // Predicated region
    $region18: #{tpu_custom_call.1} parent=1 // pred_check
      _
    $region19: #{tpu_custom_call.1} parent=1 // pred_check_branch
      %113 = sbr.rel (0) target = $region21
    $region20: #{tpu_custom_call.1} parent=1 // pred_region
      %114 = dma.done [#allocation4], 32
    $region21: #{tpu_custom_call.1} parent=1 // pred_fallthru
      _
    %115 = vsyncpa [#allocation3], 1
    %116 = vsyncpa [#allocation4], 1

</llo_original>
